<compile_context>
chip_gen: v7x
topology: tpu7x:2x2x1
jax: 0.10.0
libtpu: 0.0.40
codegen_flags: <defaults>
</compile_context>

<pallas_src>
import functools
import math

import numpy as np
import jax
import jax.numpy as jnp
from jax.experimental import pallas as pl
from jax.experimental.pallas import tpu as pltpu

_LANES = 128


def _cdiv(a, b):
    return -(-a // b)


def _round_up(x, m):
    return ((x + m - 1) // m) * m


def _mcrmse_sumsq_kernel(yhat_ref, y_ref, acc_ref, *, tile_rows, period, rows,
                         tiles_per_split, needs_mask):
    """Accumulates per-(row-within-period, lane) sums of squared errors.

    yhat_ref / y_ref : (tile_rows, 128) blocks of the flattened inputs (native dtype).
    acc_ref          : (period, 128) f32 output block, resident across the inner
                       grid axis (one independent accumulator per split).
    """
    s = pl.program_id(0)              # split (parallel across cores)
    g = pl.program_id(1)              # tile within split (reduction axis)
    lanes = acc_ref.shape[1]
    n_groups = tile_rows // period

    @pl.when(g == 0)
    def _init():
        acc_ref[...] = jnp.zeros_like(acc_ref)

    d = yhat_ref[...].astype(jnp.float32) - y_ref[...].astype(jnp.float32)
    dd = d * d                                                     # (T, 128)

    def _accumulate(vals):
        # (T,128) -> (T/period, period, 128) is a pure leading-dim split
        # (period is a multiple of the sublane tile); reduced with VPU adds,
        # then one unmasked full-block accumulator store.
        acc_ref[...] += jnp.sum(vals.reshape(n_groups, period, lanes), axis=0)

    if not needs_mask:
        _accumulate(dd)
    else:
        logical = s * tiles_per_split + g       # logical tile index
        first_masked = rows // tile_rows        # tiles >= this may read OOB rows

        if first_masked > 0:
            @pl.when(logical < first_masked)
            def _full_tile():                   # hot path: no mask work
                _accumulate(dd)

        @pl.when(logical >= first_masked)
        def _tail_tile():                       # ragged / out-of-range tile
            row = jax.lax.broadcasted_iota(jnp.int32, (tile_rows, lanes), 0)
            valid = (row + logical * tile_rows) < rows
            _accumulate(jnp.where(valid, dd, 0.0))


def mcrmse_loss(yhat, y, *, num_scored=3, eps=1e-6, block_rows=4096,
                num_splits=2):
    """Mean column-wise RMSE.  yhat, y: (B, S, num_scored), any float dtype."""
    assert yhat.shape == y.shape
    assert yhat.shape[-1] == num_scored
    total = int(np.prod(yhat.shape))
    n_per_col = total // num_scored

    # Row period after which (flat_index % num_scored) repeats across 128-lane
    # rows, rounded to the input dtype's sublane granularity so blocks stay
    # natively aligned (8 rows for f32, 16 for bf16, ...).
    itemsize = jnp.dtype(yhat.dtype).itemsize
    sublane = max(8, 32 // itemsize)
    cyc = num_scored // math.gcd(num_scored, _LANES)
    period = math.lcm(sublane, cyc)

    rows = _cdiv(total, _LANES)
    tile_cap = max(period, (block_rows // period) * period)
    tile_rows = min(tile_cap, _round_up(rows, period))
    total_tiles = _cdiv(rows, tile_rows)

    num_splits = max(1, min(num_splits, total_tiles))
    tiles_per_split = _cdiv(total_tiles, num_splits)
    covered_tiles = num_splits * tiles_per_split
    needs_mask = covered_tiles * tile_rows > rows

    # Lane-dense (rows, 128) view of the row-major flattened input.  A tail pad
    # (< 128 zeros) is only materialized for ragged totals; padded zeros
    # contribute nothing to the squared-error sums.
    # TODO(synk): for ragged totals jnp.pad copies the flattened input; a
    # manual-DMA (pl.ANY) path would avoid that copy entirely.
    pad = rows * _LANES - total
    yh = yhat.reshape(-1)
    yy = y.reshape(-1)
    if pad:
        yh = jnp.pad(yh, (0, pad))
        yy = jnp.pad(yy, (0, pad))
    yh = yh.reshape(rows, _LANES)
    yy = yy.reshape(rows, _LANES)

    # Logical tile -> row-block index.  When total_tiles % num_splits != 0 some
    # logical tiles fall past the end of the data; clamp them onto the last real
    # block (their contribution is fully masked in the kernel).
    if covered_tiles == total_tiles:
        def _row_block(s, g):
            return s * tiles_per_split + g
    else:
        def _row_block(s, g):
            return jnp.minimum(s * tiles_per_split + g, total_tiles - 1)

    in_spec = pl.BlockSpec((tile_rows, _LANES),
                           lambda s, g: (_row_block(s, g), 0))

    kernel = functools.partial(
        _mcrmse_sumsq_kernel,
        tile_rows=tile_rows, period=period, rows=rows,
        tiles_per_split=tiles_per_split, needs_mask=needs_mask)

    acc = pl.pallas_call(
        kernel,
        out_shape=jax.ShapeDtypeStruct((num_splits, period, _LANES),
                                       jnp.float32),
        grid=(num_splits, tiles_per_split),
        in_specs=[in_spec, in_spec],
        out_specs=pl.BlockSpec((None, period, _LANES), lambda s, g: (s, 0, 0)),
        compiler_params=pltpu.CompilerParams(
            dimension_semantics=("parallel", "arbitrary")),
    )(yh, yy)

    # Epilogue (runs once, over period*128 partial sums): fold the splits,
    # un-interleave the column pattern, then sqrt + mean per the PyTorch module.
    acc_total = jnp.sum(acc, axis=0)                                # (period,128)
    col_ids = ((np.arange(period)[:, None] * _LANES
                + np.arange(_LANES)[None, :]) % num_scored)         # host const
    col_sums = jnp.stack([
        jnp.sum(jnp.where(jnp.asarray(col_ids == i), acc_total, 0.0))
        for i in range(num_scored)])                                # (C,)
    rmse = jnp.sqrt(col_sums / n_per_col + eps)
    return jnp.mean(rmse)


def _reference(yhat, y, num_scored=3, eps=1e-6):
    score = 0.0
    for i in range(num_scored):
        mse = jnp.mean((yhat[:, :, i] - y[:, :, i]) ** 2)
        score += jnp.sqrt(mse + eps) / num_scored
    return score


if __name__ == "__main__":
    key = jax.random.PRNGKey(0)
    k1, k2, k3, k4, k5, k6 = jax.random.split(key, 6)

    # 1) Small shape consistent with the module (batch=2, seq=8, C=3).
    #    Exercises the ragged (<128-element) tail pad and a fully-masked tile.
    B, S, C = 2, 8, 3
    yhat = jax.random.normal(k1, (B, S, C), dtype=jnp.float32)
    y = jax.random.normal(k2, (B, S, C), dtype=jnp.float32)
    loss = mcrmse_loss(yhat, y, num_scored=C)
    jax.block_until_ready(loss)
    ref = _reference(yhat, y, num_scored=C)
    assert jnp.allclose(loss, ref, atol=1e-5, rtol=1e-5), (loss, ref)

    # 2) Larger case: multi-tile reduction, 2-way core split, clamped
    #    out-of-range tile and the masked ragged last tile.
    B2, S2 = 8, 8320
    yhat2 = jax.random.normal(k3, (B2, S2, C), dtype=jnp.float32)
    y2 = jax.random.normal(k4, (B2, S2, C), dtype=jnp.float32)
    loss2 = mcrmse_loss(yhat2, y2, num_scored=C, block_rows=768, num_splits=2)
    jax.block_until_ready(loss2)
    ref2 = _reference(yhat2, y2, num_scored=C)
    assert jnp.allclose(loss2, ref2, atol=1e-4, rtol=1e-4), (loss2, ref2)

    # Same data through the default (large single tile, no mask) configuration.
    loss2b = mcrmse_loss(yhat2, y2, num_scored=C)
    jax.block_until_ready(loss2b)
    assert jnp.allclose(loss2b, ref2, atol=1e-4, rtol=1e-4), (loss2b, ref2)

    # 3) bf16 inputs stream in their native dtype (half the HBM bytes);
    #    accumulation stays f32.
    yhat3 = jax.random.normal(k5, (4, 256, C), dtype=jnp.bfloat16)
    y3 = jax.random.normal(k6, (4, 256, C), dtype=jnp.bfloat16)
    loss3 = mcrmse_loss(yhat3, y3, num_scored=C)
    jax.block_until_ready(loss3)
    ref3 = _reference(yhat3.astype(jnp.float32), y3.astype(jnp.float32),
                      num_scored=C)
    assert jnp.allclose(loss3, ref3, atol=1e-3, rtol=1e-3), (loss3, ref3)

    print("KERNEL_OK")
</pallas_src>

<mosaic_0001>
module attributes {stable_mosaic.version = 11 : i64} {
  func.func @_mcrmse_sumsq_kernel(%arg0: i32, %arg1: i32, %arg2: memref<24x128xf32, #tpu.memory_space<vmem>>, %arg3: memref<24x128xf32, #tpu.memory_space<vmem>>, %arg4: memref<1x24x128xf32, #tpu.memory_space<vmem>>) attributes {dimension_semantics = [#tpu.dimension_semantics<parallel>, #tpu.dimension_semantics<arbitrary>], iteration_bounds = array<i64: 1, 1>, scalar_prefetch = 0 : i64, scratch_operands = 0 : i64, tpu.core_type = #tpu.core_type<tc>, window_params = [{transform_indices = @transform_0, window_bounds = array<i64: 24, 128>}, {transform_indices = @transform_1, window_bounds = array<i64: 24, 128>}, {transform_indices = @transform_2, window_bounds = array<i64: 1, 24, 128>}]} {
    %c0_i32 = arith.constant 0 : i32
    %0 = arith.cmpi eq, %arg1, %c0_i32 : i32
    %1 = arith.extui %0 : i1 to i32
    %c0_i32_0 = arith.constant 0 : i32
    %2 = arith.cmpi ne, %1, %c0_i32_0 : i32
    scf.if %2 {
      %cst = arith.constant 0.000000e+00 : f32
      %12 = vector.broadcast %cst : f32 to vector<24x128xf32>
      %c0_6 = arith.constant 0 : index
      %c0_7 = arith.constant 0 : index
      %c0_8 = arith.constant 0 : index
      %13 = vector.load %arg4[%c0_6, %c0_7, %c0_8] : memref<1x24x128xf32, #tpu.memory_space<vmem>>, vector<1x24x128xf32>
      %14 = vector.shape_cast %13 : vector<1x24x128xf32> to vector<24x128xf32>
      %15 = vector.shape_cast %12 : vector<24x128xf32> to vector<1x24x128xf32>
      tpu.vector_store %arg4[%c0_6, %c0_7, %c0_8], %15 {strides = array<i32>} : memref<1x24x128xf32, #tpu.memory_space<vmem>>, vector<1x24x128xf32>,
    } else {
    }
    %c0 = arith.constant 0 : index
    %c0_1 = arith.constant 0 : index
    %3 = vector.load %arg2[%c0, %c0_1] : memref<24x128xf32, #tpu.memory_space<vmem>>, vector<24x128xf32>
    %c0_2 = arith.constant 0 : index
    %c0_3 = arith.constant 0 : index
    %4 = vector.load %arg3[%c0_2, %c0_3] : memref<24x128xf32, #tpu.memory_space<vmem>>, vector<24x128xf32>
    %5 = arith.subf %3, %4 : vector<24x128xf32>
    %6 = arith.mulf %5, %5 : vector<24x128xf32>
    %c1_i32 = arith.constant 1 : i32
    %7 = arith.muli %arg0, %c1_i32 : i32
    %8 = arith.addi %7, %arg1 : i32
    %c0_i32_4 = arith.constant 0 : i32
    %9 = arith.cmpi sge, %8, %c0_i32_4 : i32
    %10 = arith.extui %9 : i1 to i32
    %c0_i32_5 = arith.constant 0 : i32
    %11 = arith.cmpi ne, %10, %c0_i32_5 : i32
    scf.if %11 {
      %12 = tpu.iota {dimensions = array<i32: 0>} : vector<24x128xi32>
      %c24_i32 = arith.constant 24 : i32
      %13 = arith.muli %8, %c24_i32 : i32
      %14 = vector.broadcast %13 : i32 to vector<24x128xi32>
      %15 = arith.addi %12, %14 : vector<24x128xi32>
      %c1_i32_6 = arith.constant 1 : i32
      %16 = vector.broadcast %c1_i32_6 : i32 to vector<24x128xi32>
      %17 = arith.cmpi slt, %15, %16 : vector<24x128xi32>
      %cst = arith.constant 0.000000e+00 : f32
      %18 = vector.broadcast %cst : f32 to vector<24x128xf32>
      %19 = arith.select %17, %6, %18 : vector<24x128xi1>, vector<24x128xf32>
      %c0_7 = arith.constant 0 : index
      %c0_8 = arith.constant 0 : index
      %c0_9 = arith.constant 0 : index
      %20 = vector.load %arg4[%c0_7, %c0_8, %c0_9] : memref<1x24x128xf32, #tpu.memory_space<vmem>>, vector<1x24x128xf32>
      %21 = vector.shape_cast %20 : vector<1x24x128xf32> to vector<24x128xf32>
      %22 = vector.shape_cast %19 : vector<24x128xf32> to vector<1x24x128xf32>
      %cst_10 = arith.constant dense<0.000000e+00> : vector<24x128xf32>
      %23 = vector.multi_reduction <add>, %22, %cst_10 [0] : vector<1x24x128xf32> to vector<24x128xf32>
      %24 = arith.addf %21, %23 : vector<24x128xf32>
      %c0_11 = arith.constant 0 : index
      %c0_12 = arith.constant 0 : index
      %c0_13 = arith.constant 0 : index
      %25 = vector.load %arg4[%c0_11, %c0_12, %c0_13] : memref<1x24x128xf32, #tpu.memory_space<vmem>>, vector<1x24x128xf32>
      %26 = vector.shape_cast %25 : vector<1x24x128xf32> to vector<24x128xf32>
      %27 = vector.shape_cast %24 : vector<24x128xf32> to vector<1x24x128xf32>
      tpu.vector_store %arg4[%c0_11, %c0_12, %c0_13], %27 {strides = array<i32>} : memref<1x24x128xf32, #tpu.memory_space<vmem>>, vector<1x24x128xf32>,
    } else {
    }
    return
  }
  func.func @transform_0(%arg0: i32, %arg1: i32) -> (i32, i32) {
    %c1_i32 = arith.constant 1 : i32
    %0 = arith.muli %arg0, %c1_i32 : i32
    %1 = arith.addi %0, %arg1 : i32
    %c0_i32 = arith.constant 0 : i32
    %c0_i32_0 = arith.constant 0 : i32
    return %1, %c0_i32 : i32, i32
  }
  func.func @transform_1(%arg0: i32, %arg1: i32) -> (i32, i32) {
    %c1_i32 = arith.constant 1 : i32
    %0 = arith.muli %arg0, %c1_i32 : i32
    %1 = arith.addi %0, %arg1 : i32
    %c0_i32 = arith.constant 0 : i32
    %c0_i32_0 = arith.constant 0 : i32
    return %1, %c0_i32 : i32, i32
  }
  func.func @transform_2(%arg0: i32, %arg1: i32) -> (i32, i32, i32) {
    %c0_i32 = arith.constant 0 : i32
    %c0_i32_0 = arith.constant 0 : i32
    %c0_i32_1 = arith.constant 0 : i32
    return %arg0, %c0_i32, %c0_i32_0 : i32, i32, i32
  }
}

</mosaic_0001>

<llo_original>
// kernel: tpu_custom_call.1
$region0: #{tpu_custom_call.1}
  #allocation0 [shape = 'u32[]', space=smem, size = 0x4, offset = 0x4, fixed_abs, tag = 'smem constant byte address 0x4 - core index']
  #allocation1 [shape = 'u32[144,128]{1,0:T(1,128)}', space=vmem, size = 0x12000, scoped, tag = 'internal scratch']
  %s0 = inlined_call_operand.hbm [shape: f32[1,128], index: 0, kind: input, shape index: {}]
  %s1 = inlined_call_operand.vmem [shape: f32[1,128], index: 1, kind: input, shape index: {}]
  %s2 = inlined_call_operand.hbm [shape: f32[1,24,128], index: 2, kind: output, shape index: {}]
  %s3 = sld [smem:[#allocation0]]
  $region30: #{tpu_custom_call.1} parent=0
    _
  %s5 = ssub.s32 1, %s3
  %s6 = scalar_select 0, %s5, %s3
  $region1: #{tpu_custom_call.1} parent=0
    #allocation2 [shape = 'u8[12288]{0}', space=vmem, size = 0x3000, scoped, tag = 'input window, operand 0, single buffered']
    #allocation3 [shape = 's32[1]{0}', space=sflag, size = 0x4, scoped, tag = 'scoped memory for tpu_custom_call.1']
    #allocation4 [shape = 's32[1]{0}', space=sflag, size = 0x4, scoped, tag = 'scoped memory for tpu_custom_call.1']
    #allocation5 [shape = 'u8[12288]{0}', space=vmem, size = 0x3000, scoped, tag = 'output window, operand 0, single buffered']
    %7 = vsyncpa [#allocation3], 0
    %8 = vsyncpa [#allocation4], 0
    // Predicated region
    $region2: #{tpu_custom_call.1} parent=1 // pred_check
      _
    $region3: #{tpu_custom_call.1} parent=1 // pred_check_branch
      %10 = sbr.rel (0) target = $region5
    $region4: #{tpu_custom_call.1} parent=1 // pred_region
      %s11 = sadd.s32 0, 0
      %s12 = smul.u32 24, %s11
      %s13 = ssub.s32 1, %s12
      %s14 = smul.u32 16, %s13
      %s16 = ssub.s32 384, %s14
      %17 = vsyncadd [#allocation3], %s16
      %p18 = scmp.ne.s32.totalorder 0, %s14
      %s19 = smul.addr %s12, 16
      %s20 = scalar_lea.hbm %s0, %s19
      %s21 = sshll.u32 [#allocation2], 4
      %s22 = int_to_ptr.vmem [resolvable:$true] %s21
      %s23 = sshll.u32 %s13, 4
      %27 = dma.hbm_to_vmem [thread:$0]  (%p18), %s20, %s23, %s22, [#allocation3], 16, 16, 1
    $region5: #{tpu_custom_call.1} parent=1 // pred_fallthru
      _
    // Predicated region
    $region6: #{tpu_custom_call.1} parent=1 // pred_check
      _
    $region7: #{tpu_custom_call.1} parent=1 // pred_check_branch
      %29 = sbr.rel (0) target = $region9
    $region8: #{tpu_custom_call.1} parent=1 // pred_region
      %s30 = sadd.s32 0, 0
      %s31 = smul.u32 24, %s30
      %s32 = ssub.s32 1, %s31
      %s33 = smul.u32 16, %s32
      %p34 = scmp.lt.s32.totalorder %s31, 0
      %s35 = scalar_select %p34, %s31, 0
      %s36 = scalar_lea.vmem %s1, %s35
      %s37 = sadd.s32 0, 0
      %s38 = smul.u32 24, %s37
      %s39 = ssub.s32 1, %s38
      %s40 = smul.u32 16, %s39
    $region9: #{tpu_custom_call.1} parent=1 // pred_fallthru
      _
    // Predicated region
    $region10: #{tpu_custom_call.1} parent=1 // pred_check
      _
    $region11: #{tpu_custom_call.1} parent=1 // pred_check_branch
      %42 = sbr.rel (0) target = $region13
    $region12: #{tpu_custom_call.1} parent=1 // pred_region
      %43 = dma.done [#allocation3], 384
    $region13: #{tpu_custom_call.1} parent=1 // pred_fallthru
      _
    %s44 = sadd.s32 0, 0
    %s45 = smul.u32 24, %s44
    %s46 = ssub.s32 1, %s45
    %s47 = smul.u32 16, %s46
    %p48 = scmp.lt.s32.totalorder %s45, 0
    %s49 = scalar_select %p48, %s45, 0
    %s50 = scalar_lea.vmem %s1, %s49
    %s51 = sadd.s32 0, 0
    %s52 = smul.u32 24, %s51
    %s53 = ssub.s32 1, %s52
    %s54 = smul.u32 16, %s53
    %s55 = sadd.s32 0, 0
    %s56 = smul.u32 24, %s55
    %s57 = ssub.s32 1, %s56
    %s58 = smul.u32 16, %s57
    %p59 = scmp.lt.s32.totalorder %s56, 0
    %s60 = scalar_select %p59, %s56, 0
    %s61 = scalar_lea.vmem %s1, %s60
    %s62 = sadd.s32 0, 0
    %s63 = smul.u32 24, %s62
    %s64 = ssub.s32 1, %s63
    %s65 = smul.u32 16, %s64
    %p66 = scmp.eq.s32.totalorder 0, 0
    // Predicated region
    $region14: #{tpu_custom_call.1} parent=1 // pred_check
      %p67 = pneg %p66
    $region15: #{tpu_custom_call.1} parent=1 // pred_check_branch
      %69 = sbr.rel (%p67) target = $region17
    $region16: #{tpu_custom_call.1} parent=1 // pred_region
      %70 = vst [vmem:[#allocation5] sm:$0xff] 0.0
      %71 = vst [vmem:[#allocation5 + $0x8] sm:$0xff] 0.0
      %72 = vst [vmem:[#allocation5 + $0x10] sm:$0xff] 0.0
    $region17: #{tpu_custom_call.1} parent=1 // pred_fallthru
      _
    %v73 = vld [vmem:[#allocation2] sm:$0xff]
    %v74 = vld [vmem:[#allocation2 + $0x8] sm:$0xff]
    %v75 = vld [vmem:[#allocation2 + $0x10] sm:$0xff]
    %v76 = vld [vmem:[%s61] sm:$0xff]
    %v77 = vld [vmem:[%s61 + $0x8] sm:$0xff]
    %v78 = vld [vmem:[%s61 + $0x10] sm:$0xff]
    %v79 = vsub.f32 %v73, %v76
    %v80 = vsub.f32 %v74, %v77
    %v81 = vsub.f32 %v75, %v78
    %v82 = vmul.f32 %v79, %v79
    %v83 = vmul.f32 %v80, %v80
    %v84 = vmul.f32 %v81, %v81
    %s85 = sadd.s32 0, 0
    %p86 = scmp.ge.s32.totalorder %s85, 0
    // Predicated region
    $region18: #{tpu_custom_call.1} parent=1 // pred_check
      %p87 = pneg %p86
    $region19: #{tpu_custom_call.1} parent=1 // pred_check_branch
      %89 = sbr.rel (%p87) target = $region21
    $region20: #{tpu_custom_call.1} parent=1 // pred_region
      %v90 = vlaneseq
      %v91 = vshrl.u32 %v90, 7
      %v92 = vadd.s32 %v91, 8
      %v93 = vadd.s32 %v91, 16
      %s94 = smul.u32 %s85, 24
      %v95 = vstv %s94
      %v96 = vadd.s32 %v91, %v95
      %v97 = vadd.s32 %v92, %v95
      %v98 = vadd.s32 %v93, %v95
      %vm99 = vcmp.lt.s32.totalorder %v96, 1
      %vm100 = vcmp.lt.s32.totalorder %v97, 1
      %vm101 = vcmp.lt.s32.totalorder %v98, 1
      %v102 = vsel %vm99, %v82, 0.0
      %v103 = vsel %vm100, %v83, 0.0
      %v104 = vsel %vm101, %v84, 0.0
      %v105 = vld [vmem:[#allocation5] sm:$0xff]
      %v106 = vld [vmem:[#allocation5 + $0x8] sm:$0xff]
      %v107 = vld [vmem:[#allocation5 + $0x10] sm:$0xff]
      %v108 = vadd.f32 %v102, 0.0
      %v109 = vadd.f32 %v103, 0.0
      %v110 = vadd.f32 %v104, 0.0
      %v111 = vadd.f32 %v105, %v108
      %v112 = vadd.f32 %v106, %v109
      %v113 = vadd.f32 %v107, %v110
      %114 = vst [vmem:[#allocation5] sm:$0xff] %v111
      %115 = vst [vmem:[#allocation5 + $0x8] sm:$0xff] %v112
      %116 = vst [vmem:[#allocation5 + $0x10] sm:$0xff] %v113
    $region21: #{tpu_custom_call.1} parent=1 // pred_fallthru
      _
    // Predicated region
    $region22: #{tpu_custom_call.1} parent=1 // pred_check
      _
    $region23: #{tpu_custom_call.1} parent=1 // pred_check_branch
      %118 = sbr.rel (0) target = $region25
    $region24: #{tpu_custom_call.1} parent=1 // pred_region
      %s120 = ssub.s32 384, 384
      %121 = vsyncadd [#allocation4], %s120
      %s122 = sshll.u32 [#allocation5], 4
      %s123 = int_to_ptr.vmem [resolvable:$true] %s122
      %128 = dma.vmem_to_hbm [thread:$0]  %s123, 384, %s2, [#allocation4], 128, 128, 8
    $region25: #{tpu_custom_call.1} parent=1 // pred_fallthru
      _
    // Predicated region
    $region26: #{tpu_custom_call.1} parent=1 // pred_check
      _
    $region27: #{tpu_custom_call.1} parent=1 // pred_check_branch
      %130 = sbr.rel (0) target = $region29
    $region28: #{tpu_custom_call.1} parent=1 // pred_region
      %131 = dma.done [#allocation4], 384
    $region29: #{tpu_custom_call.1} parent=1 // pred_fallthru
      _
    %132 = vsyncpa [#allocation3], 1
    %133 = vsyncpa [#allocation4], 1

</llo_original>
